<compile_context>
chip_gen: v6e
topology: v6e:2x2x1
jax: 0.10.0
libtpu: 0.0.40
codegen_flags: <defaults>
</compile_context>

<pallas_src>
import functools

import jax
import jax.numpy as jnp
from jax.experimental import pallas as pl
from jax.experimental.pallas import tpu as pltpu

STEPS = 2
ALPHA = 0.5   # surrogate-gradient width (backward only; unused in forward)
TAU = 0.25
VTH = 0.2

LANE = 128            # vreg lane width
SUB_ROWS = 64         # rows per in-register chunk (8 f32 vregs per array)
MIN_ROW_BLOCK = 256   # keep >= ~1 MiB per grid step (amortize ~0.35us overhead)
MAX_ROW_BLOCK = 1024  # v6e-friendly upper bound
VMEM_TARGET = 12 << 20  # double-buffered in+out footprint target (all gens)


def _lif_kernel(x_ref, out_ref, *, steps):
    """x_ref: (steps, R, 128) native dtype; out_ref: (T, R, 128) f32."""
    T, R, L = out_ref.shape
    sub = min(SUB_ROWS, R)

    # Hoisted zero slab for the unused time tail (created once, <= 8 vregs).
    zero_slab = jnp.zeros((sub, L), jnp.float32) if T > steps else None

    def do_chunk(r0, nrows):
        rs = pl.ds(r0, nrows)                      # static slice (Python ints)
        # step 0: u == 0 and o_prev == 0  =>  u = x[0]
        u = x_ref[0, rs, :].astype(jnp.float32)
        o = (u > VTH).astype(jnp.float32)          # == gt(u - VTH, 0).float()
        out_ref[0, rs, :] = o
        for step in range(1, steps):               # small static count: unrolled
            x_s = x_ref[step, rs, :].astype(jnp.float32)
            # o in {0, 1}:  TAU * u * (1 - o)  ==  TAU * where(o != 0, 0, u)
            u = TAU * jnp.where(o != 0.0, 0.0, u) + x_s
            o = (u > VTH).astype(jnp.float32)
            out_ref[step, rs, :] = o
        # out = zeros(x.shape): time rows >= steps stay zero.
        if T > steps:
            z = zero_slab if nrows == sub else zero_slab[:nrows]
            for t in range(steps, T):
                out_ref[t, rs, :] = z

    n_full, rem = divmod(R, sub)
    for c in range(n_full):                        # static chunk loop
        do_chunk(c * sub, sub)
    if rem:
        do_chunk(n_full * sub, rem)


def _pick_row_block(rows, T, steps, in_itemsize):
    """Rows (sublane dim) per grid block; multiple of 64 when tiled."""
    # Double-buffered VMEM bytes per row of 128 lanes: input block holds
    # `steps` time rows at native dtype, output block holds all T rows at f32.
    per_row = 2 * LANE * (steps * in_itemsize + T * 4)
    budget = max(16, VMEM_TARGET // per_row)
    if rows <= min(MIN_ROW_BLOCK, budget):
        return rows                                # single block == full dim
    # >= 2 blocks so both v7x TensorCores get work, but keep blocks >= ~256.
    desired = max(MIN_ROW_BLOCK, min(MAX_ROW_BLOCK, pl.cdiv(rows, 2)))
    rb = min(desired, budget, rows)
    if rb >= SUB_ROWS:
        rb = (rb // SUB_ROWS) * SUB_ROWS           # multiple of 64 (bf16-safe)
    else:
        rb = max(16, (rb // 16) * 16)              # bf16 sublane packing floor
    return int(rb)


def lif_spike(x, steps=STEPS):
    """Pallas implementation of LIFSpike.forward (forward pass only)."""
    assert x.shape[0] >= steps, "time (first) axis must have >= `steps` entries"
    T = x.shape[0]
    M = 1
    for d in x.shape[1:]:
        M *= d

    x2 = x.reshape(T, M)                           # native dtype, no up-cast
    pad = (-M) % LANE
    if pad:
        # TODO(synk): replace pad + final slice with an in-kernel masked store
        # of the ragged last 128-lane row to avoid two full-array HBM copies.
        x2 = jnp.pad(x2, ((0, 0), (0, pad)))       # padded zeros never spike
    rows = (M + pad) // LANE
    x3 = x2.reshape(T, rows, LANE)                 # contiguous reshape

    r_block = _pick_row_block(rows, T, steps, x3.dtype.itemsize)
    grid = (pl.cdiv(rows, r_block),)

    # Explicit scoped-VMEM budget (double-buffered in+out blocks) + headroom;
    # safe on v5e/v6e (128 MiB phys) and v7x (64 MiB phys).
    db_bytes = 2 * r_block * LANE * (steps * x3.dtype.itemsize + T * 4)
    vmem_limit = int(min(48 << 20, max(16 << 20, 2 * db_bytes)))

    kernel = functools.partial(_lif_kernel, steps=steps)
    out3 = pl.pallas_call(
        kernel,
        out_shape=jax.ShapeDtypeStruct((T, rows, LANE), jnp.float32),
        grid=grid,
        # Block the time axis of x at `steps`: rows steps..T-1 are never DMA'd.
        in_specs=[pl.BlockSpec((steps, r_block, LANE), lambda j: (0, j, 0))],
        out_specs=pl.BlockSpec((T, r_block, LANE), lambda j: (0, j, 0)),
        compiler_params=pltpu.CompilerParams(
            dimension_semantics=("parallel",),
            vmem_limit_bytes=vmem_limit,
        ),
    )(x3)

    out2 = out3.reshape(T, rows * LANE)
    if pad:
        out2 = out2[:, :M]
    return out2.reshape(x.shape)


def lif_spike_ref(x, steps=STEPS):
    """Pure-JAX reference (value-equivalent to the PyTorch module)."""
    out = jnp.zeros(x.shape, jnp.float32)
    u = jnp.zeros(x.shape[1:], jnp.float32)
    for step in range(steps):
        o_prev = out[max(step - 1, 0)]
        u = TAU * u * (1.0 - o_prev) + x[step]
        o = (u > VTH).astype(jnp.float32)
        out = out.at[step].set(o)
    return out


if __name__ == "__main__":
    key = jax.random.PRNGKey(0)

    # Main case: all dims equal, so the reference module's u=zeros(x.shape[:-1])
    # broadcast quirk is valid; M = 512 (multiple of 128, no pad path).
    x = jax.random.normal(key, (8, 8, 8, 8), dtype=jnp.float32)
    out = lif_spike(x)
    jax.block_until_ready(out)
    ref = lif_spike_ref(x)
    assert out.shape == x.shape and out.dtype == jnp.float32
    assert jnp.array_equal(out, ref), "Pallas kernel mismatch vs reference (f32)"

    # Native-dtype input path: bf16 is DMA'd as-is and cast in-kernel (exact).
    x_bf = jax.random.normal(jax.random.PRNGKey(2), (8, 8, 8, 8)).astype(jnp.bfloat16)
    out_bf = lif_spike(x_bf)
    jax.block_until_ready(out_bf)
    assert jnp.array_equal(out_bf, lif_spike_ref(x_bf)), "bf16-input mismatch"

    # Larger case: exercises the multi-block (>=2 row blocks) grid + zero tail.
    x_big = jax.random.normal(jax.random.PRNGKey(3), (8, 2, 256, 256), dtype=jnp.float32)
    out_big = lif_spike(x_big)
    jax.block_until_ready(out_big)
    assert jnp.array_equal(out_big, lif_spike_ref(x_big)), "multi-block mismatch"

    # Tiny case exercising the non-128-multiple (pad) fallback.
    x_odd = jax.random.normal(jax.random.PRNGKey(1), (4, 3, 5, 7), dtype=jnp.float32)
    out_odd = lif_spike(x_odd)
    jax.block_until_ready(out_odd)
    assert jnp.array_equal(out_odd, lif_spike_ref(x_odd)), "pad-path mismatch"

    print("KERNEL_OK")
</pallas_src>

<mosaic_0001>
module attributes {stable_mosaic.version = 11 : i64} {
  func.func @_lif_kernel(%arg0: i32, %arg1: memref<2x4x128xf32, #tpu.memory_space<vmem>>, %arg2: memref<8x4x128xf32, #tpu.memory_space<vmem>>) attributes {dimension_semantics = [#tpu.dimension_semantics<parallel>], iteration_bounds = array<i64: 1>, scalar_prefetch = 0 : i64, scratch_operands = 0 : i64, tpu.core_type = #tpu.core_type<tc>, window_params = [{transform_indices = @transform_0, window_bounds = array<i64: 2, 4, 128>}, {transform_indices = @transform_1, window_bounds = array<i64: 8, 4, 128>}]} {
    %cst = arith.constant 0.000000e+00 : f32
    %0 = vector.broadcast %cst : f32 to vector<4x128xf32>
    %c0 = arith.constant 0 : index
    %c0_0 = arith.constant 0 : index
    %c0_1 = arith.constant 0 : index
    %1 = vector.load %arg1[%c0, %c0_0, %c0_1] : memref<2x4x128xf32, #tpu.memory_space<vmem>>, vector<1x4x128xf32>
    %2 = vector.shape_cast %1 : vector<1x4x128xf32> to vector<4x128xf32>
    %cst_2 = arith.constant 2.000000e-01 : f32
    %3 = vector.broadcast %cst_2 : f32 to vector<4x128xf32>
    %4 = arith.cmpf ogt, %2, %3 : vector<4x128xf32>
    %5 = arith.extui %4 : vector<4x128xi1> to vector<4x128xi32>
    %6 = arith.sitofp %5 : vector<4x128xi32> to vector<4x128xf32>
    %c0_3 = arith.constant 0 : index
    %c0_4 = arith.constant 0 : index
    %c0_5 = arith.constant 0 : index
    %7 = vector.load %arg2[%c0_3, %c0_4, %c0_5] : memref<8x4x128xf32, #tpu.memory_space<vmem>>, vector<1x4x128xf32>
    %8 = vector.shape_cast %7 : vector<1x4x128xf32> to vector<4x128xf32>
    %9 = vector.shape_cast %6 : vector<4x128xf32> to vector<1x4x128xf32>
    tpu.vector_store %arg2[%c0_3, %c0_4, %c0_5], %9 {strides = array<i32>} : memref<8x4x128xf32, #tpu.memory_space<vmem>>, vector<1x4x128xf32>,
    %c1 = arith.constant 1 : index
    %c0_6 = arith.constant 0 : index
    %c0_7 = arith.constant 0 : index
    %10 = vector.load %arg1[%c1, %c0_6, %c0_7] : memref<2x4x128xf32, #tpu.memory_space<vmem>>, vector<1x4x128xf32>
    %11 = vector.shape_cast %10 : vector<1x4x128xf32> to vector<4x128xf32>
    %cst_8 = arith.constant 0.000000e+00 : f32
    %12 = vector.broadcast %cst_8 : f32 to vector<4x128xf32>
    %13 = arith.cmpf one, %6, %12 : vector<4x128xf32>
    %cst_9 = arith.constant 0.000000e+00 : f32
    %14 = vector.broadcast %cst_9 : f32 to vector<4x128xf32>
    %15 = arith.select %13, %14, %2 : vector<4x128xi1>, vector<4x128xf32>
    %cst_10 = arith.constant 2.500000e-01 : f32
    %16 = vector.broadcast %cst_10 : f32 to vector<4x128xf32>
    %17 = arith.mulf %16, %15 : vector<4x128xf32>
    %18 = arith.addf %17, %11 : vector<4x128xf32>
    %cst_11 = arith.constant 2.000000e-01 : f32
    %19 = vector.broadcast %cst_11 : f32 to vector<4x128xf32>
    %20 = arith.cmpf ogt, %18, %19 : vector<4x128xf32>
    %21 = arith.extui %20 : vector<4x128xi1> to vector<4x128xi32>
    %22 = arith.sitofp %21 : vector<4x128xi32> to vector<4x128xf32>
    %c1_12 = arith.constant 1 : index
    %c0_13 = arith.constant 0 : index
    %c0_14 = arith.constant 0 : index
    %23 = vector.load %arg2[%c1_12, %c0_13, %c0_14] : memref<8x4x128xf32, #tpu.memory_space<vmem>>, vector<1x4x128xf32>
    %24 = vector.shape_cast %23 : vector<1x4x128xf32> to vector<4x128xf32>
    %25 = vector.shape_cast %22 : vector<4x128xf32> to vector<1x4x128xf32>
    tpu.vector_store %arg2[%c1_12, %c0_13, %c0_14], %25 {strides = array<i32>} : memref<8x4x128xf32, #tpu.memory_space<vmem>>, vector<1x4x128xf32>,
    %c2 = arith.constant 2 : index
    %c0_15 = arith.constant 0 : index
    %c0_16 = arith.constant 0 : index
    %26 = vector.load %arg2[%c2, %c0_15, %c0_16] : memref<8x4x128xf32, #tpu.memory_space<vmem>>, vector<1x4x128xf32>
    %27 = vector.shape_cast %26 : vector<1x4x128xf32> to vector<4x128xf32>
    %28 = vector.shape_cast %0 : vector<4x128xf32> to vector<1x4x128xf32>
    tpu.vector_store %arg2[%c2, %c0_15, %c0_16], %28 {strides = array<i32>} : memref<8x4x128xf32, #tpu.memory_space<vmem>>, vector<1x4x128xf32>,
    %c3 = arith.constant 3 : index
    %c0_17 = arith.constant 0 : index
    %c0_18 = arith.constant 0 : index
    %29 = vector.load %arg2[%c3, %c0_17, %c0_18] : memref<8x4x128xf32, #tpu.memory_space<vmem>>, vector<1x4x128xf32>
    %30 = vector.shape_cast %29 : vector<1x4x128xf32> to vector<4x128xf32>
    %31 = vector.shape_cast %0 : vector<4x128xf32> to vector<1x4x128xf32>
    tpu.vector_store %arg2[%c3, %c0_17, %c0_18], %31 {strides = array<i32>} : memref<8x4x128xf32, #tpu.memory_space<vmem>>, vector<1x4x128xf32>,
    %c4 = arith.constant 4 : index
    %c0_19 = arith.constant 0 : index
    %c0_20 = arith.constant 0 : index
    %32 = vector.load %arg2[%c4, %c0_19, %c0_20] : memref<8x4x128xf32, #tpu.memory_space<vmem>>, vector<1x4x128xf32>
    %33 = vector.shape_cast %32 : vector<1x4x128xf32> to vector<4x128xf32>
    %34 = vector.shape_cast %0 : vector<4x128xf32> to vector<1x4x128xf32>
    tpu.vector_store %arg2[%c4, %c0_19, %c0_20], %34 {strides = array<i32>} : memref<8x4x128xf32, #tpu.memory_space<vmem>>, vector<1x4x128xf32>,
    %c5 = arith.constant 5 : index
    %c0_21 = arith.constant 0 : index
    %c0_22 = arith.constant 0 : index
    %35 = vector.load %arg2[%c5, %c0_21, %c0_22] : memref<8x4x128xf32, #tpu.memory_space<vmem>>, vector<1x4x128xf32>
    %36 = vector.shape_cast %35 : vector<1x4x128xf32> to vector<4x128xf32>
    %37 = vector.shape_cast %0 : vector<4x128xf32> to vector<1x4x128xf32>
    tpu.vector_store %arg2[%c5, %c0_21, %c0_22], %37 {strides = array<i32>} : memref<8x4x128xf32, #tpu.memory_space<vmem>>, vector<1x4x128xf32>,
    %c6 = arith.constant 6 : index
    %c0_23 = arith.constant 0 : index
    %c0_24 = arith.constant 0 : index
    %38 = vector.load %arg2[%c6, %c0_23, %c0_24] : memref<8x4x128xf32, #tpu.memory_space<vmem>>, vector<1x4x128xf32>
    %39 = vector.shape_cast %38 : vector<1x4x128xf32> to vector<4x128xf32>
    %40 = vector.shape_cast %0 : vector<4x128xf32> to vector<1x4x128xf32>
    tpu.vector_store %arg2[%c6, %c0_23, %c0_24], %40 {strides = array<i32>} : memref<8x4x128xf32, #tpu.memory_space<vmem>>, vector<1x4x128xf32>,
    %c7 = arith.constant 7 : index
    %c0_25 = arith.constant 0 : index
    %c0_26 = arith.constant 0 : index
    %41 = vector.load %arg2[%c7, %c0_25, %c0_26] : memref<8x4x128xf32, #tpu.memory_space<vmem>>, vector<1x4x128xf32>
    %42 = vector.shape_cast %41 : vector<1x4x128xf32> to vector<4x128xf32>
    %43 = vector.shape_cast %0 : vector<4x128xf32> to vector<1x4x128xf32>
    tpu.vector_store %arg2[%c7, %c0_25, %c0_26], %43 {strides = array<i32>} : memref<8x4x128xf32, #tpu.memory_space<vmem>>, vector<1x4x128xf32>,
    return
  }
  func.func @transform_0(%arg0: i32) -> (i32, i32, i32) {
    %c0_i32 = arith.constant 0 : i32
    %c0_i32_0 = arith.constant 0 : i32
    %c0_i32_1 = arith.constant 0 : i32
    return %c0_i32, %arg0, %c0_i32_0 : i32, i32, i32
  }
  func.func @transform_1(%arg0: i32) -> (i32, i32, i32) {
    %c0_i32 = arith.constant 0 : i32
    %c0_i32_0 = arith.constant 0 : i32
    %c0_i32_1 = arith.constant 0 : i32
    return %c0_i32, %arg0, %c0_i32_0 : i32, i32, i32
  }
}

</mosaic_0001>

<llo_original>
// kernel: tpu_custom_call.1
$region0: #{tpu_custom_call.1}
  #allocation0 [shape = 'u32[]', space=smem, size = 0x4, offset = 0x4, fixed_abs, tag = 'smem constant byte address 0x4 - core index']
  #allocation1 [shape = 'u32[144,128]{1,0:T(1,128)}', space=vmem, size = 0x12000, scoped, tag = 'internal scratch']
  %s0 = inlined_call_operand.hbm [shape: f32[8,4,128], index: 0, kind: input, shape index: {}]
  %s1 = inlined_call_operand.hbm [shape: f32[8,4,128], index: 1, kind: output, shape index: {}]
  %s2 = sld [smem:[#allocation0]]
  $region18: #{tpu_custom_call.1} parent=0
    _
  %s4 = ssub.s32 1, %s2
  %s5 = scalar_select 0, %s4, %s2
  $region1: #{tpu_custom_call.1} parent=0
    #allocation2 [shape = 'u8[4096]{0}', space=vmem, size = 0x1000, scoped, tag = 'input window, operand 0, single buffered']
    #allocation3 [shape = 's32[1]{0}', space=sflag, size = 0x4, scoped, tag = 'scoped memory for tpu_custom_call.1']
    #allocation4 [shape = 's32[1]{0}', space=sflag, size = 0x4, scoped, tag = 'scoped memory for tpu_custom_call.1']
    #allocation5 [shape = 'u8[16384]{0}', space=vmem, size = 0x4000, scoped, tag = 'output window, operand 0, single buffered']
    %6 = vsyncpa [#allocation3], 0
    %7 = vsyncpa [#allocation4], 0
    // Predicated region
    $region2: #{tpu_custom_call.1} parent=1 // pred_check
      _
    $region3: #{tpu_custom_call.1} parent=1 // pred_check_branch
      %9 = sbr.rel (0) target = $region5
    $region4: #{tpu_custom_call.1} parent=1 // pred_region
      %s11 = ssub.s32 128, 128
      %12 = vsyncadd [#allocation3], %s11
      %s13 = sshll.u32 [#allocation2], 4
      %s14 = int_to_ptr.vmem [resolvable:$true] %s13
      %19 = dma.hbm_to_vmem [thread:$0]  %s0, 128, %s14, [#allocation3], 64, 64, 4
    $region5: #{tpu_custom_call.1} parent=1 // pred_fallthru
      _
    // Predicated region
    $region6: #{tpu_custom_call.1} parent=1 // pred_check
      _
    $region7: #{tpu_custom_call.1} parent=1 // pred_check_branch
      %21 = sbr.rel (0) target = $region9
    $region8: #{tpu_custom_call.1} parent=1 // pred_region
      %22 = dma.done [#allocation3], 128
    $region9: #{tpu_custom_call.1} parent=1 // pred_fallthru
      _
    %v23 = vld [vmem:[#allocation2] sm:$0xf]
    %vm24 = vcmp.gt.f32.partialorder %v23, 0.2
    %v25 = vsel %vm24, 1, 0
    %v26 = vcvt.s32.f32 %v25
    %27 = vst [vmem:[#allocation5] sm:$0xf] %v26
    %s28 = scalar_lea.vmem [#allocation2], 4
    %v29 = vld [vmem:[%s28] sm:$0xf]
    %vm30 = vcmp.ne.f32.partialorder %v26, 0.0
    %v31 = vsel %vm30, 0.0, %v23
    %v32 = vmul.f32 %v31, 0.25
    %v33 = vadd.f32 %v32, %v29
    %vm34 = vcmp.gt.f32.partialorder %v33, 0.2
    %v35 = vsel %vm34, 1, 0
    %v36 = vcvt.s32.f32 %v35
    %s37 = scalar_lea.vmem [#allocation5], 4
    %38 = vst [vmem:[%s37] sm:$0xf] %v36
    %s39 = scalar_lea.vmem [#allocation5], 8
    %40 = vst [vmem:[%s39] sm:$0xf] 0.0
    %s41 = scalar_lea.vmem [#allocation5], 12
    %42 = vst [vmem:[%s41] sm:$0xf] 0.0
    %s43 = scalar_lea.vmem [#allocation5], 16
    %44 = vst [vmem:[%s43] sm:$0xf] 0.0
    %s45 = scalar_lea.vmem [#allocation5], 20
    %46 = vst [vmem:[%s45] sm:$0xf] 0.0
    %s47 = scalar_lea.vmem [#allocation5], 24
    %48 = vst [vmem:[%s47] sm:$0xf] 0.0
    %s49 = scalar_lea.vmem [#allocation5], 28
    %50 = vst [vmem:[%s49] sm:$0xf] 0.0
    // Predicated region
    $region10: #{tpu_custom_call.1} parent=1 // pred_check
      _
    $region11: #{tpu_custom_call.1} parent=1 // pred_check_branch
      %52 = sbr.rel (0) target = $region13
    $region12: #{tpu_custom_call.1} parent=1 // pred_region
      %s54 = ssub.s32 512, 512
      %55 = vsyncadd [#allocation4], %s54
      %s56 = sshll.u32 [#allocation5], 4
      %s57 = int_to_ptr.vmem [resolvable:$true] %s56
      %62 = dma.vmem_to_hbm [thread:$0]  %s57, 512, %s1, [#allocation4], 64, 64, 4
    $region13: #{tpu_custom_call.1} parent=1 // pred_fallthru
      _
    // Predicated region
    $region14: #{tpu_custom_call.1} parent=1 // pred_check
      _
    $region15: #{tpu_custom_call.1} parent=1 // pred_check_branch
      %64 = sbr.rel (0) target = $region17
    $region16: #{tpu_custom_call.1} parent=1 // pred_region
      %65 = dma.done [#allocation4], 512
    $region17: #{tpu_custom_call.1} parent=1 // pred_fallthru
      _
    %66 = vsyncpa [#allocation3], 1
    %67 = vsyncpa [#allocation4], 1

</llo_original>
